<compile_context>
chip_gen: v7x
topology: tpu7x:2x2x1
jax: 0.10.0
libtpu: 0.0.40
codegen_flags: <defaults>
</compile_context>

<pallas_src>
import jax
import jax.numpy as jnp
from jax.experimental import pallas as pl
from jax.experimental.pallas import tpu as pltpu


def _round_up(x, m):
    return ((x + m - 1) // m) * m


def _mlp_kernel(x_ref, gw_ref, uw_ref, dw_ref, o_ref, acc_ref):
    # x_ref:  (tm, H)   token tile            (compute dtype, e.g. bf16)
    # gw_ref: (H, ti)   gate_proj weight tile (transposed, [in, out])
    # uw_ref: (H, ti)   up_proj weight tile
    # dw_ref: (ti, H)   down_proj weight tile
    # o_ref:  (tm, H)   output tile (written once, on the last I-step)
    # acc_ref:(tm, H)   f32 VMEM accumulator across the I (reduction) axis
    k = pl.program_id(1)

    @pl.when(k == 0)
    def _():
        acc_ref[...] = jnp.zeros_like(acc_ref)

    x = x_ref[...]
    g = jnp.dot(x, gw_ref[...], preferred_element_type=jnp.float32)   # (tm, ti) f32
    u = jnp.dot(x, uw_ref[...], preferred_element_type=jnp.float32)   # (tm, ti) f32
    # SiLU(g) = g * sigmoid(g); exp + approx reciprocal ride the EUP slot.
    h = g * pl.reciprocal(1.0 + jnp.exp(-g), approx=True) * u
    acc_ref[...] += jnp.dot(
        h.astype(dw_ref.dtype), dw_ref[...], preferred_element_type=jnp.float32
    )

    @pl.when(k == pl.num_programs(1) - 1)
    def _():
        o_ref[...] = acc_ref[...].astype(o_ref.dtype)


def boss_mlp(x, gate_w, up_w, down_w, *, tm=256, ti=512,
             compute_dtype=jnp.bfloat16):
    """SwiGLU MLP forward.

    x:       [T, H]
    gate_w:  [H, I]  (nn.Linear weight transposed, i.e. [in, out])
    up_w:    [H, I]
    down_w:  [I, H]
    Returns  [T, H] in x.dtype.
    """
    T, H = x.shape
    Hg, I = gate_w.shape
    assert Hg == H and up_w.shape == (H, I) and down_w.shape == (I, H)
    out_dtype = x.dtype

    # Clamp tiles for small shapes; tm stays a multiple of 8 (sublane),
    # ti a multiple of 128 (lane) unless I itself is smaller.
    tm = min(tm, _round_up(T, 8))
    ti = min(ti, _round_up(I, 128))

    # Pad ragged token / intermediate extents instead of asserting.
    T_pad = _round_up(T, tm)
    I_pad = _round_up(I, ti)
    if T_pad != T:
        x = jnp.pad(x, ((0, T_pad - T), (0, 0)))
    if I_pad != I:
        # Zero-padded intermediate columns produce silu(0)*0 = 0 -> no effect.
        gate_w = jnp.pad(gate_w, ((0, 0), (0, I_pad - I)))
        up_w = jnp.pad(up_w, ((0, 0), (0, I_pad - I)))
        down_w = jnp.pad(down_w, ((0, I_pad - I), (0, 0)))

    # Cast once in the wrapper: bf16 matmul inputs (f32 accumulate in-kernel)
    # and half the weight/activation DMA traffic.
    xc = x.astype(compute_dtype)
    gwc = gate_w.astype(compute_dtype)
    uwc = up_w.astype(compute_dtype)
    dwc = down_w.astype(compute_dtype)

    grid = (T_pad // tm, I_pad // ti)
    itemsize = jnp.dtype(compute_dtype).itemsize
    cost = pl.CostEstimate(
        flops=6 * T_pad * H * I_pad,
        transcendentals=T_pad * I_pad,
        bytes_accessed=(xc.size + gwc.size + uwc.size + dwc.size) * itemsize
        + T_pad * H * jnp.dtype(out_dtype).itemsize,
    )

    out = pl.pallas_call(
        _mlp_kernel,
        out_shape=jax.ShapeDtypeStruct((T_pad, H), out_dtype),
        grid_spec=pltpu.PrefetchScalarGridSpec(
            num_scalar_prefetch=0,
            grid=grid,
            in_specs=[
                pl.BlockSpec((tm, H), lambda i, k: (i, 0)),   # x: resident over k
                pl.BlockSpec((H, ti), lambda i, k: (0, k)),   # gate_w
                pl.BlockSpec((H, ti), lambda i, k: (0, k)),   # up_w
                pl.BlockSpec((ti, H), lambda i, k: (k, 0)),   # down_w
            ],
            out_specs=pl.BlockSpec((tm, H), lambda i, k: (i, 0)),
            scratch_shapes=[pltpu.VMEM((tm, H), jnp.float32)],
        ),
        compiler_params=pltpu.CompilerParams(
            dimension_semantics=("parallel", "arbitrary"),
            vmem_limit_bytes=64 << 20,  # fits v7x's 64 MiB; headroom on v5e/v6e
        ),
        cost_estimate=cost,
    )(xc, gwc, uwc, dwc)

    if T_pad != T:
        out = out[:T]
    return out


if __name__ == "__main__":
    # Small config consistent with the module: hidden_size=32, intermediate_size=128
    batch, seq, hidden, inter = 2, 8, 32, 128

    key = jax.random.PRNGKey(0)
    k_x, k_g, k_u, k_d = jax.random.split(key, 4)

    hidden_state = jax.random.normal(k_x, (batch, seq, hidden), dtype=jnp.float32)

    # Deterministic params (nn.Linear stores [out, in]; kernel takes [in, out]).
    gate_w = jax.random.normal(k_g, (hidden, inter), dtype=jnp.float32) * 0.05
    up_w = jax.random.normal(k_u, (hidden, inter), dtype=jnp.float32) * 0.05
    down_w = jax.random.normal(k_d, (inter, hidden), dtype=jnp.float32) * 0.05

    # Flatten (batch, seq) -> tokens for the kernel, restore afterwards.
    x2d = hidden_state.reshape(batch * seq, hidden)
    out2d = boss_mlp(x2d, gate_w, up_w, down_w)
    out = out2d.reshape(batch, seq, hidden)
    jax.block_until_ready(out)

    # Pure-JAX f32 reference; kernel uses bf16 matmul inputs, so tolerance is
    # loosened accordingly.
    g_ref = x2d @ gate_w
    u_ref = x2d @ up_w
    ref = ((g_ref * jax.nn.sigmoid(g_ref)) * u_ref) @ down_w
    ref = ref.reshape(batch, seq, hidden)
    assert jnp.allclose(out, ref, atol=2e-2, rtol=2e-2), "mismatch vs reference"

    print("KERNEL_OK")
</pallas_src>

<mosaic_0001>
module attributes {stable_mosaic.version = 11 : i64} {
  func.func @_mlp_kernel(%arg0: i32, %arg1: i32, %arg2: memref<16x32xbf16, #tpu.memory_space<vmem>>, %arg3: memref<32x128xbf16, #tpu.memory_space<vmem>>, %arg4: memref<32x128xbf16, #tpu.memory_space<vmem>>, %arg5: memref<128x32xbf16, #tpu.memory_space<vmem>>, %arg6: memref<16x32xf32, #tpu.memory_space<vmem>>, %arg7: memref<16x32xf32, #tpu.memory_space<vmem>>) attributes {dimension_semantics = [#tpu.dimension_semantics<parallel>, #tpu.dimension_semantics<arbitrary>], iteration_bounds = array<i64: 1, 1>, scalar_prefetch = 0 : i64, scratch_operands = 1 : i64, tpu.core_type = #tpu.core_type<tc>, window_params = [{transform_indices = @transform_0, window_bounds = array<i64: 16, 32>}, {transform_indices = @transform_1, window_bounds = array<i64: 32, 128>}, {transform_indices = @transform_2, window_bounds = array<i64: 32, 128>}, {transform_indices = @transform_3, window_bounds = array<i64: 128, 32>}, {transform_indices = @transform_4, window_bounds = array<i64: 16, 32>}]} {
    %c0_i32 = arith.constant 0 : i32
    %0 = arith.cmpi eq, %arg1, %c0_i32 : i32
    %1 = arith.extui %0 : i1 to i32
    %c0_i32_0 = arith.constant 0 : i32
    %2 = arith.cmpi ne, %1, %c0_i32_0 : i32
    scf.if %2 {
      %cst_18 = arith.constant 0.000000e+00 : f32
      %25 = vector.broadcast %cst_18 : f32 to vector<16x32xf32>
      %c0_19 = arith.constant 0 : index
      %c0_20 = arith.constant 0 : index
      %26 = vector.load %arg7[%c0_19, %c0_20] : memref<16x32xf32, #tpu.memory_space<vmem>>, vector<16x32xf32>
      tpu.vector_store %arg7[%c0_19, %c0_20], %25 {strides = array<i32>} : memref<16x32xf32, #tpu.memory_space<vmem>>, vector<16x32xf32>,
    } else {
    }
    %c0 = arith.constant 0 : index
    %c0_1 = arith.constant 0 : index
    %3 = vector.load %arg2[%c0, %c0_1] : memref<16x32xbf16, #tpu.memory_space<vmem>>, vector<16x32xbf16>
    %c0_2 = arith.constant 0 : index
    %c0_3 = arith.constant 0 : index
    %4 = vector.load %arg3[%c0_2, %c0_3] : memref<32x128xbf16, #tpu.memory_space<vmem>>, vector<32x128xbf16>
    %cst = arith.constant dense<0.000000e+00> : vector<16x128xf32>
    %5 = tpu.matmul %3, %4, %cst {dimension_numbers = #tpu.dot_dimension_numbers<[1], [0], [0], [1], [0, 0, 1, 1], [], []>} : vector<16x32xbf16>, vector<32x128xbf16>, vector<16x128xf32> -> vector<16x128xf32>
    %c0_4 = arith.constant 0 : index
    %c0_5 = arith.constant 0 : index
    %6 = vector.load %arg4[%c0_4, %c0_5] : memref<32x128xbf16, #tpu.memory_space<vmem>>, vector<32x128xbf16>
    %cst_6 = arith.constant dense<0.000000e+00> : vector<16x128xf32>
    %7 = tpu.matmul %3, %6, %cst_6 {dimension_numbers = #tpu.dot_dimension_numbers<[1], [0], [0], [1], [0, 0, 1, 1], [], []>} : vector<16x32xbf16>, vector<32x128xbf16>, vector<16x128xf32> -> vector<16x128xf32>
    %cst_7 = arith.constant 0.000000e+00 : f32
    %8 = vector.broadcast %cst_7 : f32 to vector<16x128xf32>
    %9 = arith.subf %8, %5 : vector<16x128xf32>
    %10 = math.exp %9 : vector<16x128xf32>
    %cst_8 = arith.constant 1.000000e+00 : f32
    %11 = vector.broadcast %cst_8 : f32 to vector<16x128xf32>
    %12 = arith.addf %11, %10 : vector<16x128xf32>
    %13 = tpu.reciprocal %12 {approx = true} : vector<16x128xf32> -> vector<16x128xf32>
    %14 = arith.mulf %5, %13 : vector<16x128xf32>
    %15 = arith.mulf %14, %7 : vector<16x128xf32>
    %c0_9 = arith.constant 0 : index
    %c0_10 = arith.constant 0 : index
    %16 = vector.load %arg7[%c0_9, %c0_10] : memref<16x32xf32, #tpu.memory_space<vmem>>, vector<16x32xf32>
    %17 = arith.truncf %15 : vector<16x128xf32> to vector<16x128xbf16>
    %c0_11 = arith.constant 0 : index
    %c0_12 = arith.constant 0 : index
    %18 = vector.load %arg5[%c0_11, %c0_12] : memref<128x32xbf16, #tpu.memory_space<vmem>>, vector<128x32xbf16>
    %cst_13 = arith.constant dense<0.000000e+00> : vector<16x32xf32>
    %19 = tpu.matmul %17, %18, %cst_13 {dimension_numbers = #tpu.dot_dimension_numbers<[1], [0], [0], [1], [0, 0, 1, 1], [], []>} : vector<16x128xbf16>, vector<128x32xbf16>, vector<16x32xf32> -> vector<16x32xf32>
    %20 = arith.addf %16, %19 : vector<16x32xf32>
    %c0_14 = arith.constant 0 : index
    %c0_15 = arith.constant 0 : index
    %21 = vector.load %arg7[%c0_14, %c0_15] : memref<16x32xf32, #tpu.memory_space<vmem>>, vector<16x32xf32>
    tpu.vector_store %arg7[%c0_14, %c0_15], %20 {strides = array<i32>} : memref<16x32xf32, #tpu.memory_space<vmem>>, vector<16x32xf32>,
    %c0_i32_16 = arith.constant 0 : i32
    %22 = arith.cmpi eq, %arg1, %c0_i32_16 : i32
    %23 = arith.extui %22 : i1 to i32
    %c0_i32_17 = arith.constant 0 : i32
    %24 = arith.cmpi ne, %23, %c0_i32_17 : i32
    scf.if %24 {
      %c0_18 = arith.constant 0 : index
      %c0_19 = arith.constant 0 : index
      %25 = vector.load %arg7[%c0_18, %c0_19] : memref<16x32xf32, #tpu.memory_space<vmem>>, vector<16x32xf32>
      %c0_20 = arith.constant 0 : index
      %c0_21 = arith.constant 0 : index
      %26 = vector.load %arg6[%c0_20, %c0_21] : memref<16x32xf32, #tpu.memory_space<vmem>>, vector<16x32xf32>
      tpu.vector_store %arg6[%c0_20, %c0_21], %25 {strides = array<i32>} : memref<16x32xf32, #tpu.memory_space<vmem>>, vector<16x32xf32>,
    } else {
    }
    return
  }
  func.func @transform_0(%arg0: i32, %arg1: i32) -> (i32, i32) {
    %c0_i32 = arith.constant 0 : i32
    %c0_i32_0 = arith.constant 0 : i32
    return %arg0, %c0_i32 : i32, i32
  }
  func.func @transform_1(%arg0: i32, %arg1: i32) -> (i32, i32) {
    %c0_i32 = arith.constant 0 : i32
    %c0_i32_0 = arith.constant 0 : i32
    return %c0_i32, %arg1 : i32, i32
  }
  func.func @transform_2(%arg0: i32, %arg1: i32) -> (i32, i32) {
    %c0_i32 = arith.constant 0 : i32
    %c0_i32_0 = arith.constant 0 : i32
    return %c0_i32, %arg1 : i32, i32
  }
  func.func @transform_3(%arg0: i32, %arg1: i32) -> (i32, i32) {
    %c0_i32 = arith.constant 0 : i32
    %c0_i32_0 = arith.constant 0 : i32
    return %arg1, %c0_i32 : i32, i32
  }
  func.func @transform_4(%arg0: i32, %arg1: i32) -> (i32, i32) {
    %c0_i32 = arith.constant 0 : i32
    %c0_i32_0 = arith.constant 0 : i32
    return %arg0, %c0_i32 : i32, i32
  }
}

</mosaic_0001>

<llo_original>
// kernel: tpu_custom_call.1
$region0: #{tpu_custom_call.1}
  #allocation0 [shape = 'u32[]', space=smem, size = 0x4, offset = 0x4, fixed_abs, tag = 'smem constant byte address 0x4 - core index']
  #allocation1 [shape = 'u32[144,128]{1,0:T(1,128)}', space=vmem, size = 0x12000, scoped, tag = 'internal scratch']
  #allocation2 [shape = 'f32[16,32]{1,0:T(8,128)}', space=vmem, size = 0x2000, scoped, tag = 'scratch operand']
  %s0 = inlined_call_operand.hbm [shape: bf16[16,32], index: 0, kind: input, shape index: {}]
  %s1 = inlined_call_operand.hbm [shape: bf16[32,128], index: 1, kind: input, shape index: {}]
  %s2 = inlined_call_operand.hbm [shape: bf16[32,128], index: 2, kind: input, shape index: {}]
  %s3 = inlined_call_operand.hbm [shape: bf16[128,32], index: 3, kind: input, shape index: {}]
  %s4 = inlined_call_operand.hbm [shape: f32[16,32], index: 4, kind: output, shape index: {}]
  %s5 = sld [smem:[#allocation0]]
  $region50: #{tpu_custom_call.1} parent=0
    _
  %s7 = ssub.s32 1, %s5
  %s8 = scalar_select 0, %s7, %s5
  $region1: #{tpu_custom_call.1} parent=0
    #allocation3 [shape = 'u8[4096]{0}', space=vmem, size = 0x1000, scoped, tag = 'input window, operand 0, single buffered']
    #allocation4 [shape = 's32[1]{0}', space=sflag, size = 0x4, scoped, tag = 'scoped memory for tpu_custom_call.1']
    #allocation5 [shape = 's32[1]{0}', space=sflag, size = 0x4, scoped, tag = 'scoped memory for tpu_custom_call.1']
    #allocation6 [shape = 'u8[8192]{0}', space=vmem, size = 0x2000, scoped, tag = 'input window, operand 1, single buffered']
    #allocation7 [shape = 's32[1]{0}', space=sflag, size = 0x4, scoped, tag = 'scoped memory for tpu_custom_call.1']
    #allocation8 [shape = 'u8[8192]{0}', space=vmem, size = 0x2000, scoped, tag = 'input window, operand 2, single buffered']
    #allocation9 [shape = 'u8[32768]{0}', space=vmem, size = 0x8000, scoped, tag = 'input window, operand 3, single buffered']
    #allocation10 [shape = 's32[1]{0}', space=sflag, size = 0x4, scoped, tag = 'scoped memory for tpu_custom_call.1']
    #allocation11 [shape = 'u8[8192]{0}', space=vmem, size = 0x2000, scoped, tag = 'output window, operand 0, single buffered']
    %9 = vsyncpa [#allocation4], 0
    %10 = vsyncpa [#allocation7], 0
    %11 = vsyncpa [#allocation10], 0
    %12 = vsyncpa [#allocation5], 0
    // Predicated region
    $region2: #{tpu_custom_call.1} parent=1 // pred_check
      _
    $region3: #{tpu_custom_call.1} parent=1 // pred_check_branch
      %14 = sbr.rel (0) target = $region5
    $region4: #{tpu_custom_call.1} parent=1 // pred_region
      %s16 = ssub.s32 128, 128
      %17 = vsyncadd [#allocation4], %s16
      %s18 = sshll.u32 [#allocation3], 4
      %s19 = int_to_ptr.vmem [resolvable:$true] %s18
      %24 = dma.hbm_to_vmem [thread:$0]  %s0, 128, %s19, [#allocation4], 64, 64, 4
    $region5: #{tpu_custom_call.1} parent=1 // pred_fallthru
      _
    // Predicated region
    $region6: #{tpu_custom_call.1} parent=1 // pred_check
      _
    $region7: #{tpu_custom_call.1} parent=1 // pred_check_branch
      %26 = sbr.rel (0) target = $region9
    $region8: #{tpu_custom_call.1} parent=1 // pred_region
      %s28 = ssub.s32 256, 256
      %29 = vsyncadd [#allocation7], %s28
      %s30 = sshll.u32 [#allocation6], 4
      %s31 = int_to_ptr.vmem [resolvable:$true] %s30
      %36 = dma.hbm_to_vmem [thread:$0]  %s1, 256, %s31, [#allocation7], 64, 64, 4
    $region9: #{tpu_custom_call.1} parent=1 // pred_fallthru
      _
    // Predicated region
    $region10: #{tpu_custom_call.1} parent=1 // pred_check
      _
    $region11: #{tpu_custom_call.1} parent=1 // pred_check_branch
      %38 = sbr.rel (0) target = $region13
    $region12: #{tpu_custom_call.1} parent=1 // pred_region
      %s40 = ssub.s32 256, 256
      %41 = vsyncadd [#allocation7], %s40
      %s42 = sshll.u32 [#allocation8], 4
      %s43 = int_to_ptr.vmem [resolvable:$true] %s42
      %48 = dma.hbm_to_vmem [thread:$0]  %s2, 256, %s43, [#allocation7], 64, 64, 4
    $region13: #{tpu_custom_call.1} parent=1 // pred_fallthru
      _
    // Predicated region
    $region14: #{tpu_custom_call.1} parent=1 // pred_check
      _
    $region15: #{tpu_custom_call.1} parent=1 // pred_check_branch
      %50 = sbr.rel (0) target = $region17
    $region16: #{tpu_custom_call.1} parent=1 // pred_region
      %s52 = ssub.s32 1024, 1024
      %53 = vsyncadd [#allocation10], %s52
      %s54 = sshll.u32 [#allocation9], 4
      %s55 = int_to_ptr.vmem [resolvable:$true] %s54
      %60 = dma.hbm_to_vmem [thread:$0]  %s3, 1024, %s55, [#allocation10], 64, 64, 4
    $region17: #{tpu_custom_call.1} parent=1 // pred_fallthru
      _
    // Predicated region
    $region18: #{tpu_custom_call.1} parent=1 // pred_check
      _
    $region19: #{tpu_custom_call.1} parent=1 // pred_check_branch
      %62 = sbr.rel (0) target = $region21
    $region20: #{tpu_custom_call.1} parent=1 // pred_region
      %63 = dma.done [#allocation4], 128
    $region21: #{tpu_custom_call.1} parent=1 // pred_fallthru
      _
    // Predicated region
    $region22: #{tpu_custom_call.1} parent=1 // pred_check
      _
    $region23: #{tpu_custom_call.1} parent=1 // pred_check_branch
      %65 = sbr.rel (0) target = $region25
    $region24: #{tpu_custom_call.1} parent=1 // pred_region
      %66 = dma.done [#allocation7], 256
    $region25: #{tpu_custom_call.1} parent=1 // pred_fallthru
      _
    // Predicated region
    $region26: #{tpu_custom_call.1} parent=1 // pred_check
      _
    $region27: #{tpu_custom_call.1} parent=1 // pred_check_branch
      %68 = sbr.rel (0) target = $region29
    $region28: #{tpu_custom_call.1} parent=1 // pred_region
      %69 = dma.done [#allocation7], 256
    $region29: #{tpu_custom_call.1} parent=1 // pred_fallthru
      _
    // Predicated region
    $region30: #{tpu_custom_call.1} parent=1 // pred_check
      _
    $region31: #{tpu_custom_call.1} parent=1 // pred_check_branch
      %71 = sbr.rel (0) target = $region33
    $region32: #{tpu_custom_call.1} parent=1 // pred_region
      %72 = dma.done [#allocation10], 1024
    $region33: #{tpu_custom_call.1} parent=1 // pred_fallthru
      _
    %p74 = scmp.eq.s32.totalorder 0, 0
    // Predicated region
    $region34: #{tpu_custom_call.1} parent=1 // pred_check
      %p75 = pneg %p74
    $region35: #{tpu_custom_call.1} parent=1 // pred_check_branch
      %77 = sbr.rel (%p75) target = $region37
    $region36: #{tpu_custom_call.1} parent=1 // pred_region
      %vm78 = vcmask 261120
      %79 = vst.msk [vmem:[#allocation2] sm:$0xff] %vm78, 0.0
      %80 = vst.msk [vmem:[#allocation2 + $0x8] sm:$0xff] %vm78, 0.0
    $region37: #{tpu_custom_call.1} parent=1 // pred_fallthru
      _
    %v81 = vld [vmem:[#allocation3] sm:$0xf]
    %v82 = vld [vmem:[#allocation3 + $0x4] sm:$0xf]
    %v83 = vld [vmem:[#allocation6] sm:$0xf]
    %v84 = vld [vmem:[#allocation6 + $0x4] sm:$0xf]
    %v85 = vld [vmem:[#allocation6 + $0x8] sm:$0xf]
    %v86 = vld [vmem:[#allocation6 + $0xc] sm:$0xf]
    %v89 = vunpack.c.l.b16 %v81
    %v90 = vunpack.c.l.b16 %v82
    %v91 = vpack.c.b16 %v90, %v89
    %v96 = vunpack.c.l.b16 %v83
    %v97 = vunpack.c.l.b16 %v84
    %v98 = vunpack.c.l.b16 %v85
    %v99 = vunpack.c.l.b16 %v86
    %v100 = vpack.c.b16 %v97, %v96
    %v101 = vpack.c.b16 %v99, %v98
    %vm104 = vcmask 261120
    %v106 = vsel %vm104, %v91, 0
    %108 = vmatprep.subr.bf16.mxu0 0
    %109 = vmatpush1.bf16.msra.mxu0 %v100
    %110 = vmatprep.subr.bf16.mxu0 0
    %111 = vmatpush1.bf16.msra.mxu0 %v101
    %112 = vmatprep.subr.bf16.mxu0 0
    %113 = vmatpush1.bf16.msra.mxu0 0
    %114 = vmatprep.subr.bf16.mxu0 0
    %115 = vmatpush1.bf16.msra.mxu0 0
    %116 = vmatprep.subr.bf16.mxu0 0
    %117 = vmatpush1.bf16.msra.mxu0 0
    %118 = vmatprep.subr.bf16.mxu0 0
    %119 = vmatpush1.bf16.msra.mxu0 0
    %120 = vmatprep.subr.bf16.mxu0 0
    %121 = vmatpush1.bf16.msra.mxu0 0
    %122 = vmatprep.subr.bf16.mxu0 0
    %123 = vmatpush1.bf16.msra.mxu0 0
    %124 = vmatprep.subr.bf16.mxu0 0
    %125 = vmatpush1.bf16.msra.mxu0 0
    %126 = vmatprep.subr.bf16.mxu0 0
    %127 = vmatpush1.bf16.msra.mxu0 0
    %128 = vmatprep.subr.bf16.mxu0 0
    %129 = vmatpush1.bf16.msra.mxu0 0
    %130 = vmatprep.subr.bf16.mxu0 0
    %131 = vmatpush1.bf16.msra.mxu0 0
    %132 = vmatprep.subr.bf16.mxu0 0
    %133 = vmatpush1.bf16.msra.mxu0 0
    %134 = vmatprep.subr.bf16.mxu0 0
    %135 = vmatpush1.bf16.msra.mxu0 0
    %136 = vmatprep.subr.bf16.mxu0 0
    %137 = vmatpush1.bf16.msra.mxu0 0
    %138 = vmatprep.subr.bf16.mxu0 0
    %139 = vmatpush1.bf16.msra.mxu0 0
    %140 = vmatprep.mubr.bf16.mxu0 0
    %141 = vmatmul.mubr.bf16.gmra.mrb[0].mxu0 %v106
    %v142 = vpop.f32.mrb[0].mxu0
    %v143 = vadd.f32 0.0, %v142
    %v144 = vpop.f32.mrb[0].mxu0
    %v145 = vpop.f32.mrb[0].mxu0
    %v146 = vadd.f32 0.0, %v145
    %v147 = vpop.f32.mrb[0].mxu0
    %148 = vdwg.mxu0
    %v149 = vld [vmem:[#allocation8] sm:$0xf]
    %v150 = vld [vmem:[#allocation8 + $0x4] sm:$0xf]
    %v151 = vld [vmem:[#allocation8 + $0x8] sm:$0xf]
    %v152 = vld [vmem:[#allocation8 + $0xc] sm:$0xf]
    %v157 = vunpack.c.l.b16 %v149
    %v158 = vunpack.c.l.b16 %v150
    %v159 = vunpack.c.l.b16 %v151
    %v160 = vunpack.c.l.b16 %v152
    %v161 = vpack.c.b16 %v158, %v157
    %v162 = vpack.c.b16 %v160, %v159
    %165 = vmatprep.subr.bf16.mxu0 0
    %166 = vmatpush1.bf16.msra.mxu0 %v161
    %167 = vmatprep.subr.bf16.mxu0 0
    %168 = vmatpush1.bf16.msra.mxu0 %v162
    %169 = vmatprep.subr.bf16.mxu0 0
    %170 = vmatpush1.bf16.msra.mxu0 0
    %171 = vmatprep.subr.bf16.mxu0 0
    %172 = vmatpush1.bf16.msra.mxu0 0
    %173 = vmatprep.subr.bf16.mxu0 0
    %174 = vmatpush1.bf16.msra.mxu0 0
    %175 = vmatprep.subr.bf16.mxu0 0
    %176 = vmatpush1.bf16.msra.mxu0 0
    %177 = vmatprep.subr.bf16.mxu0 0
    %178 = vmatpush1.bf16.msra.mxu0 0
    %179 = vmatprep.subr.bf16.mxu0 0
    %180 = vmatpush1.bf16.msra.mxu0 0
    %181 = vmatprep.subr.bf16.mxu0 0
    %182 = vmatpush1.bf16.msra.mxu0 0
    %183 = vmatprep.subr.bf16.mxu0 0
    %184 = vmatpush1.bf16.msra.mxu0 0
    %185 = vmatprep.subr.bf16.mxu0 0
    %186 = vmatpush1.bf16.msra.mxu0 0
    %187 = vmatprep.subr.bf16.mxu0 0
    %188 = vmatpush1.bf16.msra.mxu0 0
    %189 = vmatprep.subr.bf16.mxu0 0
    %190 = vmatpush1.bf16.msra.mxu0 0
    %191 = vmatprep.subr.bf16.mxu0 0
    %192 = vmatpush1.bf16.msra.mxu0 0
    %193 = vmatprep.subr.bf16.mxu0 0
    %194 = vmatpush1.bf16.msra.mxu0 0
    %195 = vmatprep.subr.bf16.mxu0 0
    %196 = vmatpush1.bf16.msra.mxu0 0
    %197 = vmatprep.mubr.bf16.mxu0 0
    %198 = vmatmul.mubr.bf16.gmra.mrb[0].mxu0 %v106
    %v199 = vpop.f32.mrb[0].mxu0
    %v200 = vadd.f32 0.0, %v199
    %v201 = vpop.f32.mrb[0].mxu0
    %v202 = vpop.f32.mrb[0].mxu0
    %v203 = vadd.f32 0.0, %v202
    %v204 = vpop.f32.mrb[0].mxu0
    %205 = vdwg.mxu0
    %v206 = vsub.f32 0.0, %v143
    %v207 = vsub.f32 0.0, %v146
    %v208 = vmul.f32 %v206, 1.442695
    %v209 = vpow.pop %v208
    %v210 = vmul.f32 %v207, 1.442695
    %v211 = vpow.pop %v210
    %v212 = vadd.f32 %v209, 1.0
    %v213 = vadd.f32 %v211, 1.0
    %v214 = vrcp.pop %v212
    %v215 = vrcp.pop %v213
    %v216 = vmul.f32 %v143, %v214
    %v217 = vmul.f32 %v146, %v215
    %v218 = vmul.f32 %v216, %v200
    %v219 = vmul.f32 %v217, %v203
    %v220 = vld [vmem:[#allocation2] sm:$0xff]
    %v221 = vld [vmem:[#allocation2 + $0x8] sm:$0xff]
    %v222 = vpack.c.bf16 %v219, %v218
    %v223 = vld [vmem:[#allocation9] sm:$0xf]
    %v224 = vld [vmem:[#allocation9 + $0x4] sm:$0xf]
    %v225 = vld [vmem:[#allocation9 + $0x8] sm:$0xf]
    %v226 = vld [vmem:[#allocation9 + $0xc] sm:$0xf]
    %v227 = vld [vmem:[#allocation9 + $0x10] sm:$0xf]
    %v228 = vld [vmem:[#allocation9 + $0x14] sm:$0xf]
    %v229 = vld [vmem:[#allocation9 + $0x18] sm:$0xf]
    %v230 = vld [vmem:[#allocation9 + $0x1c] sm:$0xf]
    %v231 = vld [vmem:[#allocation9 + $0x20] sm:$0xf]
    %v232 = vld [vmem:[#allocation9 + $0x24] sm:$0xf]
    %v233 = vld [vmem:[#allocation9 + $0x28] sm:$0xf]
    %v234 = vld [vmem:[#allocation9 + $0x2c] sm:$0xf]
    %v235 = vld [vmem:[#allocation9 + $0x30] sm:$0xf]
    %v236 = vld [vmem:[#allocation9 + $0x34] sm:$0xf]
    %v237 = vld [vmem:[#allocation9 + $0x38] sm:$0xf]
    %v238 = vld [vmem:[#allocation9 + $0x3c] sm:$0xf]
    %v255 = vunpack.c.l.b16 %v223
    %v256 = vunpack.c.l.b16 %v224
    %v257 = vunpack.c.l.b16 %v225
    %v258 = vunpack.c.l.b16 %v226
    %v259 = vunpack.c.l.b16 %v227
    %v260 = vunpack.c.l.b16 %v228
    %v261 = vunpack.c.l.b16 %v229
    %v262 = vunpack.c.l.b16 %v230
    %v263 = vunpack.c.l.b16 %v231
    %v264 = vunpack.c.l.b16 %v232
    %v265 = vunpack.c.l.b16 %v233
    %v266 = vunpack.c.l.b16 %v234
    %v267 = vunpack.c.l.b16 %v235
    %v268 = vunpack.c.l.b16 %v236
    %v269 = vunpack.c.l.b16 %v237
    %v270 = vunpack.c.l.b16 %v238
    %v271 = vpack.c.b16 %v256, %v255
    %v272 = vpack.c.b16 %v258, %v257
    %v273 = vpack.c.b16 %v260, %v259
    %v274 = vpack.c.b16 %v262, %v261
    %v275 = vpack.c.b16 %v264, %v263
    %v276 = vpack.c.b16 %v266, %v265
    %v277 = vpack.c.b16 %v268, %v267
    %v278 = vpack.c.b16 %v270, %v269
    %287 = vmatprep.subr.bf16.mxu0 0
    %288 = vmatpush1.bf16.msra.mxu0 %v271
    %289 = vmatprep.subr.bf16.mxu0 0
    %290 = vmatpush1.bf16.msra.mxu0 %v272
    %291 = vmatprep.subr.bf16.mxu0 0
    %292 = vmatpush1.bf16.msra.mxu0 %v273
    %293 = vmatprep.subr.bf16.mxu0 0
    %294 = vmatpush1.bf16.msra.mxu0 %v274
    %295 = vmatprep.subr.bf16.mxu0 0
    %296 = vmatpush1.bf16.msra.mxu0 %v275
    %297 = vmatprep.subr.bf16.mxu0 0
    %298 = vmatpush1.bf16.msra.mxu0 %v276
    %299 = vmatprep.subr.bf16.mxu0 0
    %300 = vmatpush1.bf16.msra.mxu0 %v277
    %301 = vmatprep.subr.bf16.mxu0 0
    %302 = vmatpush1.bf16.msra.mxu0 %v278
    %303 = vmatprep.subr.bf16.mxu0 0
    %304 = vmatpush1.bf16.msra.mxu0 0
    %305 = vmatprep.subr.bf16.mxu0 0
    %306 = vmatpush1.bf16.msra.mxu0 0
    %307 = vmatprep.subr.bf16.mxu0 0
    %308 = vmatpush1.bf16.msra.mxu0 0
    %309 = vmatprep.subr.bf16.mxu0 0
    %310 = vmatpush1.bf16.msra.mxu0 0
    %311 = vmatprep.subr.bf16.mxu0 0
    %312 = vmatpush1.bf16.msra.mxu0 0
    %313 = vmatprep.subr.bf16.mxu0 0
    %314 = vmatpush1.bf16.msra.mxu0 0
    %315 = vmatprep.subr.bf16.mxu0 0
    %316 = vmatpush1.bf16.msra.mxu0 0
    %317 = vmatprep.subr.bf16.mxu0 0
    %318 = vmatpush1.bf16.msra.mxu0 0
    %319 = vmatprep.mubr.bf16.mxu0 0
    %320 = vmatmul.mubr.bf16.gmra.mrb[0].mxu0 %v222
    %v321 = vpop.f32.mrb[0].mxu0
    %v322 = vadd.f32 0.0, %v321
    %v323 = vpop.f32.mrb[0].mxu0
    %v324 = vpop.f32.mrb[0].mxu0
    %v325 = vadd.f32 0.0, %v324
    %v326 = vpop.f32.mrb[0].mxu0
    %327 = vdwg.mxu0
    %v328 = vadd.f32 %v220, %v322
    %v329 = vadd.f32 %v221, %v325
    %330 = vst.msk [vmem:[#allocation2] sm:$0xff] %vm104, %v328
    %331 = vst.msk [vmem:[#allocation2 + $0x8] sm:$0xff] %vm104, %v329
    // Predicated region
    $region38: #{tpu_custom_call.1} parent=1 // pred_check
      %p332 = pneg %p74
    $region39: #{tpu_custom_call.1} parent=1 // pred_check_branch
      %334 = sbr.rel (%p332) target = $region41
    $region40: #{tpu_custom_call.1} parent=1 // pred_region
      %v335 = vld [vmem:[#allocation2] sm:$0xff]
      %v336 = vld [vmem:[#allocation2 + $0x8] sm:$0xff]
      %337 = vst.msk [vmem:[#allocation11] sm:$0xff] %vm104, %v335
      %338 = vst.msk [vmem:[#allocation11 + $0x8] sm:$0xff] %vm104, %v336
    $region41: #{tpu_custom_call.1} parent=1 // pred_fallthru
      _
    // Predicated region
    $region42: #{tpu_custom_call.1} parent=1 // pred_check
      _
    $region43: #{tpu_custom_call.1} parent=1 // pred_check_branch
      %340 = sbr.rel (0) target = $region45
    $region44: #{tpu_custom_call.1} parent=1 // pred_region
      %s342 = ssub.s32 256, 256
      %343 = vsyncadd [#allocation5], %s342
      %s344 = sshll.u32 [#allocation11], 4
      %s345 = int_to_ptr.vmem [resolvable:$true] %s344
      %350 = dma.vmem_to_hbm [thread:$0]  %s345, 256, %s4, [#allocation5], 128, 128, 8
    $region45: #{tpu_custom_call.1} parent=1 // pred_fallthru
      _
    // Predicated region
    $region46: #{tpu_custom_call.1} parent=1 // pred_check
      _
    $region47: #{tpu_custom_call.1} parent=1 // pred_check_branch
      %352 = sbr.rel (0) target = $region49
    $region48: #{tpu_custom_call.1} parent=1 // pred_region
      %353 = dma.done [#allocation5], 256
    $region49: #{tpu_custom_call.1} parent=1 // pred_fallthru
      _
    %354 = vsyncpa [#allocation4], 1
    %355 = vsyncpa [#allocation7], 1
    %356 = vsyncpa [#allocation10], 1
    %357 = vsyncpa [#allocation5], 1

</llo_original>
